<compile_context>
chip_gen: v7x
topology: tpu7x:2x2x1
jax: 0.10.0
libtpu: 0.0.40
codegen_flags: <defaults>
</compile_context>

<pallas_src>
import jax
import jax.numpy as jnp
from jax.experimental import pallas as pl
from jax.experimental.pallas import tpu as pltpu

NEG_INF = -1e30  # finite "minus infinity" for padded vocab lanes


def _round_up(x, m):
    return ((x + m - 1) // m) * m


# ----------------------------------------------------------------------------
# Fused multi-step decoder kernel
# ----------------------------------------------------------------------------
def make_decoder_kernel(num_layers, B, E, H, V, O_pad):
    """Kernel ref layout:
      ids_ref   [T, B] int32 (SMEM, scalar prefetch)
      emb_ref   [V, E]  bf16
      per layer l: w_ih_ref [In_l, 4H] bf16, w_hh_ref [H, 4H] bf16, b_ref [1, 4H] f32
      fc_w_ref  [H, O_pad] bf16 (zero-padded lanes)
      fc_b_ref  [1, O_pad] f32  (-1e30 padded lanes)
      h0c0_ref  [B, 2*L*H] f32  initial packed state [h0|c0|h1|c1|...]
      logp_ref  [1, B, O_pad] f32   (block of [T, B, O_pad])
      state_ref [B, 2*L*H] f32      final packed state (written at last step)
      state_vmem[B, 2*L*H] f32      VMEM scratch carrying state across steps
    """

    def kernel(ids_ref, emb_ref, *refs):
        n_lr = 3 * num_layers
        layer_refs = refs[:n_lr]
        (fc_w_ref, fc_b_ref, h0c0_ref,
         logp_ref, state_out_ref, state_vmem) = refs[n_lr:n_lr + 6]

        t = pl.program_id(0)

        # Load the initial recurrent state into the resident VMEM scratch.
        @pl.when(t == 0)
        def _():
            state_vmem[...] = h0c0_ref[...]

        # ---- Embedding lookup: one-hot MXU matmul (V tiny here). ----
        sub_iota = jax.lax.broadcasted_iota(jnp.int32, (B, V), 0)
        lane_iota = jax.lax.broadcasted_iota(jnp.int32, (B, V), 1)
        onehot = jnp.zeros((B, V), jnp.float32)
        for b in range(B):  # B is small; scalar reads from SMEM
            tok = ids_ref[t, b]
            onehot = jnp.where((sub_iota == b) & (lane_iota == tok), 1.0, onehot)
        x = jnp.dot(onehot.astype(jnp.bfloat16), emb_ref[...],
                    preferred_element_type=jnp.float32)              # [B, E] f32
        # Dropout is identity in eval mode.

        # ---- Stacked LSTM cells, one time step, unrolled over layers. ----
        state = state_vmem[...]                                       # [B, 2LH]
        new_cols = []
        for l in range(num_layers):
            w_ih_ref = layer_refs[3 * l]
            w_hh_ref = layer_refs[3 * l + 1]
            b_ref = layer_refs[3 * l + 2]
            h_prev = state[:, l * 2 * H: l * 2 * H + H]               # [B, H]
            c_prev = state[:, l * 2 * H + H: (l + 1) * 2 * H]         # [B, H]

            gates = (jnp.dot(x.astype(jnp.bfloat16), w_ih_ref[...],
                             preferred_element_type=jnp.float32)
                     + jnp.dot(h_prev.astype(jnp.bfloat16), w_hh_ref[...],
                               preferred_element_type=jnp.float32)
                     + b_ref[...])                                    # [B, 4H] f32

            # Gate order (i, f, o, g): sigmoid over 3H, tanh over H.
            sg = jax.nn.sigmoid(gates[:, :3 * H])
            g_g = jnp.tanh(gates[:, 3 * H:])
            i_g = sg[:, 0 * H:1 * H]
            f_g = sg[:, 1 * H:2 * H]
            o_g = sg[:, 2 * H:3 * H]

            c_new = f_g * c_prev + i_g * g_g
            h_new = o_g * jnp.tanh(c_new)
            new_cols += [h_new, c_new]
            x = h_new  # input to next layer (inter-layer dropout = 0 in eval)

        new_state = jnp.concatenate(new_cols, axis=-1)                # [B, 2LH]
        state_vmem[...] = new_state

        @pl.when(t == pl.num_programs(0) - 1)
        def _():
            state_out_ref[...] = new_state

        # ---- Linear + LogSoftmax over the lane-dense padded vocab axis. ----
        logits = (jnp.dot(x.astype(jnp.bfloat16), fc_w_ref[...],
                          preferred_element_type=jnp.float32)
                  + fc_b_ref[...])                                    # [B, O_pad]
        m = jnp.max(logits, axis=1, keepdims=True)
        shifted = logits - m
        lse = jnp.log(jnp.sum(jnp.exp(shifted), axis=1, keepdims=True))
        logp_ref[0] = shifted - lse

    return kernel


# ----------------------------------------------------------------------------
# Parameters
# ----------------------------------------------------------------------------
def init_decoder_params(key, hidden_dim, output_dim, emd_dim, num_layers):
    keys = jax.random.split(key, 4 * num_layers + 3)
    k = iter(keys)
    scale = 0.1

    emb = (scale * jax.random.normal(next(k), (output_dim, emd_dim), jnp.float32)
           ).astype(jnp.bfloat16)

    layers = []
    for layer in range(num_layers):
        in_dim = emd_dim if layer == 0 else hidden_dim
        w_ih_t = scale * jax.random.normal(next(k), (in_dim, 4 * hidden_dim), jnp.float32)
        w_hh_t = scale * jax.random.normal(next(k), (hidden_dim, 4 * hidden_dim), jnp.float32)
        b_ih = scale * jax.random.normal(next(k), (1, 4 * hidden_dim), jnp.float32)
        b_hh = scale * jax.random.normal(next(k), (1, 4 * hidden_dim), jnp.float32)
        layers.append({
            "w_ih_t": w_ih_t.astype(jnp.bfloat16),   # gate order (i, f, o, g)
            "w_hh_t": w_hh_t.astype(jnp.bfloat16),
            "b": b_ih + b_hh,                        # f32
        })

    fc_w_t = scale * jax.random.normal(next(k), (hidden_dim, output_dim), jnp.float32)
    fc_b = scale * jax.random.normal(next(k), (1, output_dim), jnp.float32)

    o_pad = _round_up(output_dim, 128)
    fc_w_t_pad = jnp.pad(fc_w_t, ((0, 0), (0, o_pad - output_dim))).astype(jnp.bfloat16)
    fc_b_pad = jnp.pad(fc_b, ((0, 0), (0, o_pad - output_dim)), constant_values=NEG_INF)

    return {"emb": emb, "layers": layers,
            "fc_w_t_pad": fc_w_t_pad, "fc_b_pad": fc_b_pad}


# ----------------------------------------------------------------------------
# Forward (T fused decode steps; T=1 reproduces the module's single-step call)
# ----------------------------------------------------------------------------
@jax.jit
def decoder_decode(params, token_ids, h0, c0):
    """
    token_ids: [T, B] int32  (teacher-forced ids for T decode steps)
    h0, c0:    [L, B, H] f32
    returns:   (log_probs [T, B, output_dim], (h_T, c_T) each [L, B, H])
    """
    emb = params["emb"]
    V, E = emb.shape
    L, B, H = h0.shape
    T = token_ids.shape[0]
    fc_w = params["fc_w_t_pad"]
    fc_b = params["fc_b_pad"]
    O_pad = fc_w.shape[1]

    ids = token_ids.astype(jnp.int32)

    # Pack recurrent state lane-dense: [B, 2LH] row = [h_0 | c_0 | h_1 | c_1 | ...]
    hc = jnp.stack([h0, c0], axis=1)                       # [L, 2, B, H]
    h0c0 = jnp.transpose(hc, (2, 0, 1, 3)).reshape(B, 2 * L * H)

    def resident(shape):                                    # weights: VMEM-resident
        return pl.BlockSpec(shape, lambda t, ids_ref: (0, 0))

    inputs = [emb]
    in_specs = [resident(emb.shape)]
    for p in params["layers"]:
        inputs += [p["w_ih_t"], p["w_hh_t"], p["b"]]
        in_specs += [resident(p["w_ih_t"].shape),
                     resident(p["w_hh_t"].shape),
                     resident(p["b"].shape)]
    inputs += [fc_w, fc_b, h0c0]
    in_specs += [resident(fc_w.shape), resident(fc_b.shape), resident(h0c0.shape)]

    out_specs = (pl.BlockSpec((1, B, O_pad), lambda t, ids_ref: (t, 0, 0)),
                 pl.BlockSpec((B, 2 * L * H), lambda t, ids_ref: (0, 0)))
    out_shape = (jax.ShapeDtypeStruct((T, B, O_pad), jnp.float32),
                 jax.ShapeDtypeStruct((B, 2 * L * H), jnp.float32))

    kernel = make_decoder_kernel(L, B, E, H, V, O_pad)

    mm_flops_step = 2 * B * (V * E
                             + sum((E if l == 0 else H) * 4 * H + H * 4 * H
                                   for l in range(L))
                             + H * O_pad)
    weight_bytes = (emb.size * 2
                    + sum(p["w_ih_t"].size * 2 + p["w_hh_t"].size * 2 + p["b"].size * 4
                          for p in params["layers"])
                    + fc_w.size * 2 + fc_b.size * 4)
    cost = pl.CostEstimate(
        flops=T * mm_flops_step,
        transcendentals=T * B * (L * 5 * H + O_pad),
        bytes_accessed=weight_bytes + 2 * h0c0.size * 4 + T * B * (4 + O_pad * 4))

    logp_pad, state_out = pl.pallas_call(
        kernel,
        out_shape=out_shape,
        grid_spec=pltpu.PrefetchScalarGridSpec(
            num_scalar_prefetch=1,
            grid=(T,),
            in_specs=in_specs,
            out_specs=out_specs,
            scratch_shapes=[pltpu.VMEM((B, 2 * L * H), jnp.float32)],
        ),
        compiler_params=pltpu.CompilerParams(
            dimension_semantics=("arbitrary",),   # steps carry recurrent state
            vmem_limit_bytes=32 * 1024 * 1024,
        ),
        cost_estimate=cost,
    )(ids, *inputs)

    log_probs = logp_pad[:, :, :V]                          # strip padded lanes
    st = state_out.reshape(B, L, 2, H).transpose(1, 2, 0, 3)  # [L, 2, B, H]
    return log_probs, (st[:, 0], st[:, 1])


# ----------------------------------------------------------------------------
# Pure-JAX reference (same bf16 weights, f32 accumulation)
# ----------------------------------------------------------------------------
def decoder_decode_ref(params, token_ids, h0, c0):
    T, _ = token_ids.shape
    L, _, H = h0.shape
    V = params["emb"].shape[0]
    h = [h0[l] for l in range(L)]
    c = [c0[l] for l in range(L)]
    lps = []
    for t in range(T):
        x = jnp.take(params["emb"], token_ids[t], axis=0).astype(jnp.float32)
        for l in range(L):
            p = params["layers"][l]
            gates = (jnp.dot(x.astype(jnp.bfloat16), p["w_ih_t"],
                             preferred_element_type=jnp.float32)
                     + jnp.dot(h[l].astype(jnp.bfloat16), p["w_hh_t"],
                               preferred_element_type=jnp.float32)
                     + p["b"])
            i_g = jax.nn.sigmoid(gates[:, 0 * H:1 * H])
            f_g = jax.nn.sigmoid(gates[:, 1 * H:2 * H])
            o_g = jax.nn.sigmoid(gates[:, 2 * H:3 * H])
            g_g = jnp.tanh(gates[:, 3 * H:4 * H])
            c[l] = f_g * c[l] + i_g * g_g
            h[l] = o_g * jnp.tanh(c[l])
            x = h[l]
        logits = (jnp.dot(x.astype(jnp.bfloat16), params["fc_w_t_pad"][:, :V],
                          preferred_element_type=jnp.float32)
                  + params["fc_b_pad"][:, :V])
        lps.append(jax.nn.log_softmax(logits, axis=1))
    return jnp.stack(lps, 0), (jnp.stack(h, 0), jnp.stack(c, 0))


if __name__ == "__main__":
    batch_size = 8
    hidden_dim = 32
    emd_dim = 32
    output_dim = 64      # vocab size
    num_layers = 2
    num_steps = 4        # fused decode steps (grid axis)

    key = jax.random.PRNGKey(0)
    kp, ki, kh, kc = jax.random.split(key, 4)

    params = init_decoder_params(kp, hidden_dim, output_dim, emd_dim, num_layers)
    token_ids = jax.random.randint(ki, (num_steps, batch_size), 0, output_dim,
                                   dtype=jnp.int32)
    h0 = jax.random.normal(kh, (num_layers, batch_size, hidden_dim), jnp.float32)
    c0 = jax.random.normal(kc, (num_layers, batch_size, hidden_dim), jnp.float32)

    log_probs, (h_new, c_new) = decoder_decode(params, token_ids, h0, c0)
    jax.block_until_ready((log_probs, h_new, c_new))

    ref_lp, (ref_h, ref_c) = decoder_decode_ref(params, token_ids, h0, c0)
    assert log_probs.shape == (num_steps, batch_size, output_dim)
    assert h_new.shape == (num_layers, batch_size, hidden_dim)
    assert c_new.shape == (num_layers, batch_size, hidden_dim)
    assert jnp.allclose(log_probs, ref_lp, atol=1e-2), float(jnp.max(jnp.abs(log_probs - ref_lp)))
    assert jnp.allclose(h_new, ref_h, atol=1e-2), float(jnp.max(jnp.abs(h_new - ref_h)))
    assert jnp.allclose(c_new, ref_c, atol=1e-2), float(jnp.max(jnp.abs(c_new - ref_c)))

    print("KERNEL_OK")
</pallas_src>

<mosaic_0001>
module attributes {stable_mosaic.version = 11 : i64} {
  func.func @kernel(%arg0: i32, %arg1: memref<4x8xi32, #tpu.memory_space<smem>>, %arg2: memref<64x32xbf16, #tpu.memory_space<vmem>>, %arg3: memref<32x128xbf16, #tpu.memory_space<vmem>>, %arg4: memref<32x128xbf16, #tpu.memory_space<vmem>>, %arg5: memref<1x128xf32, #tpu.memory_space<vmem>>, %arg6: memref<32x128xbf16, #tpu.memory_space<vmem>>, %arg7: memref<32x128xbf16, #tpu.memory_space<vmem>>, %arg8: memref<1x128xf32, #tpu.memory_space<vmem>>, %arg9: memref<32x128xbf16, #tpu.memory_space<vmem>>, %arg10: memref<1x128xf32, #tpu.memory_space<vmem>>, %arg11: memref<8x128xf32, #tpu.memory_space<vmem>>, %arg12: memref<1x8x128xf32, #tpu.memory_space<vmem>>, %arg13: memref<8x128xf32, #tpu.memory_space<vmem>>, %arg14: memref<8x128xf32, #tpu.memory_space<vmem>>) attributes {dimension_semantics = [#tpu.dimension_semantics<arbitrary>], iteration_bounds = array<i64: 4>, scalar_prefetch = 1 : i64, scratch_operands = 1 : i64, tpu.core_type = #tpu.core_type<tc>, window_params = [{pipeline_mode = #tpu.pipeline_mode<synchronous>, transform_indices = @transform_0, window_bounds = array<i64: 64, 32>}, {pipeline_mode = #tpu.pipeline_mode<synchronous>, transform_indices = @transform_1, window_bounds = array<i64: 32, 128>}, {pipeline_mode = #tpu.pipeline_mode<synchronous>, transform_indices = @transform_2, window_bounds = array<i64: 32, 128>}, {pipeline_mode = #tpu.pipeline_mode<synchronous>, transform_indices = @transform_3, window_bounds = array<i64: 1, 128>}, {pipeline_mode = #tpu.pipeline_mode<synchronous>, transform_indices = @transform_4, window_bounds = array<i64: 32, 128>}, {pipeline_mode = #tpu.pipeline_mode<synchronous>, transform_indices = @transform_5, window_bounds = array<i64: 32, 128>}, {pipeline_mode = #tpu.pipeline_mode<synchronous>, transform_indices = @transform_6, window_bounds = array<i64: 1, 128>}, {pipeline_mode = #tpu.pipeline_mode<synchronous>, transform_indices = @transform_7, window_bounds = array<i64: 32, 128>}, {pipeline_mode = #tpu.pipeline_mode<synchronous>, transform_indices = @transform_8, window_bounds = array<i64: 1, 128>}, {pipeline_mode = #tpu.pipeline_mode<synchronous>, transform_indices = @transform_9, window_bounds = array<i64: 8, 128>}, {transform_indices = @transform_10, window_bounds = array<i64: 1, 8, 128>}, {pipeline_mode = #tpu.pipeline_mode<synchronous>, transform_indices = @transform_11, window_bounds = array<i64: 8, 128>}]} {
    %c0_i32 = arith.constant 0 : i32
    %0 = arith.cmpi eq, %arg0, %c0_i32 : i32
    %1 = arith.extui %0 : i1 to i32
    %c0_i32_0 = arith.constant 0 : i32
    %2 = arith.cmpi ne, %1, %c0_i32_0 : i32
    scf.if %2 {
      %c0_47 = arith.constant 0 : index
      %c0_48 = arith.constant 0 : index
      %162 = vector.load %arg11[%c0_47, %c0_48] : memref<8x128xf32, #tpu.memory_space<vmem>>, vector<8x128xf32>
      %c0_49 = arith.constant 0 : index
      %c0_50 = arith.constant 0 : index
      %163 = vector.load %arg14[%c0_49, %c0_50] : memref<8x128xf32, #tpu.memory_space<vmem>>, vector<8x128xf32>
      tpu.vector_store %arg14[%c0_49, %c0_50], %162 {strides = array<i32>} : memref<8x128xf32, #tpu.memory_space<vmem>>, vector<8x128xf32>,
    } else {
    }
    %3 = tpu.iota {dimensions = array<i32: 0>} : vector<8x64xi32>
    %4 = tpu.iota {dimensions = array<i32: 1>} : vector<8x64xi32>
    %cst = arith.constant 0.000000e+00 : f32
    %5 = vector.broadcast %cst : f32 to vector<8x64xf32>
    %6 = arith.index_cast %arg0 : i32 to index
    %c0 = arith.constant 0 : index
    %7 = memref.load %arg1[%6, %c0] : memref<4x8xi32, #tpu.memory_space<smem>>
    %c0_i32_1 = arith.constant 0 : i32
    %8 = vector.broadcast %c0_i32_1 : i32 to vector<8x64xi32>
    %9 = arith.cmpi eq, %3, %8 : vector<8x64xi32>
    %10 = vector.broadcast %7 : i32 to vector<8x64xi32>
    %11 = arith.cmpi eq, %4, %10 : vector<8x64xi32>
    %12 = arith.andi %9, %11 : vector<8x64xi1>
    %cst_2 = arith.constant 1.000000e+00 : f32
    %13 = vector.broadcast %cst_2 : f32 to vector<8x64xf32>
    %14 = arith.select %12, %13, %5 : vector<8x64xi1>, vector<8x64xf32>
    %15 = arith.index_cast %arg0 : i32 to index
    %c1 = arith.constant 1 : index
    %16 = memref.load %arg1[%15, %c1] : memref<4x8xi32, #tpu.memory_space<smem>>
    %c1_i32 = arith.constant 1 : i32
    %17 = vector.broadcast %c1_i32 : i32 to vector<8x64xi32>
    %18 = arith.cmpi eq, %3, %17 : vector<8x64xi32>
    %19 = vector.broadcast %16 : i32 to vector<8x64xi32>
    %20 = arith.cmpi eq, %4, %19 : vector<8x64xi32>
    %21 = arith.andi %18, %20 : vector<8x64xi1>
    %cst_3 = arith.constant 1.000000e+00 : f32
    %22 = vector.broadcast %cst_3 : f32 to vector<8x64xf32>
    %23 = arith.select %21, %22, %14 : vector<8x64xi1>, vector<8x64xf32>
    %24 = arith.index_cast %arg0 : i32 to index
    %c2 = arith.constant 2 : index
    %25 = memref.load %arg1[%24, %c2] : memref<4x8xi32, #tpu.memory_space<smem>>
    %c2_i32 = arith.constant 2 : i32
    %26 = vector.broadcast %c2_i32 : i32 to vector<8x64xi32>
    %27 = arith.cmpi eq, %3, %26 : vector<8x64xi32>
    %28 = vector.broadcast %25 : i32 to vector<8x64xi32>
    %29 = arith.cmpi eq, %4, %28 : vector<8x64xi32>
    %30 = arith.andi %27, %29 : vector<8x64xi1>
    %cst_4 = arith.constant 1.000000e+00 : f32
    %31 = vector.broadcast %cst_4 : f32 to vector<8x64xf32>
    %32 = arith.select %30, %31, %23 : vector<8x64xi1>, vector<8x64xf32>
    %33 = arith.index_cast %arg0 : i32 to index
    %c3 = arith.constant 3 : index
    %34 = memref.load %arg1[%33, %c3] : memref<4x8xi32, #tpu.memory_space<smem>>
    %c3_i32 = arith.constant 3 : i32
    %35 = vector.broadcast %c3_i32 : i32 to vector<8x64xi32>
    %36 = arith.cmpi eq, %3, %35 : vector<8x64xi32>
    %37 = vector.broadcast %34 : i32 to vector<8x64xi32>
    %38 = arith.cmpi eq, %4, %37 : vector<8x64xi32>
    %39 = arith.andi %36, %38 : vector<8x64xi1>
    %cst_5 = arith.constant 1.000000e+00 : f32
    %40 = vector.broadcast %cst_5 : f32 to vector<8x64xf32>
    %41 = arith.select %39, %40, %32 : vector<8x64xi1>, vector<8x64xf32>
    %42 = arith.index_cast %arg0 : i32 to index
    %c4 = arith.constant 4 : index
    %43 = memref.load %arg1[%42, %c4] : memref<4x8xi32, #tpu.memory_space<smem>>
    %c4_i32 = arith.constant 4 : i32
    %44 = vector.broadcast %c4_i32 : i32 to vector<8x64xi32>
    %45 = arith.cmpi eq, %3, %44 : vector<8x64xi32>
    %46 = vector.broadcast %43 : i32 to vector<8x64xi32>
    %47 = arith.cmpi eq, %4, %46 : vector<8x64xi32>
    %48 = arith.andi %45, %47 : vector<8x64xi1>
    %cst_6 = arith.constant 1.000000e+00 : f32
    %49 = vector.broadcast %cst_6 : f32 to vector<8x64xf32>
    %50 = arith.select %48, %49, %41 : vector<8x64xi1>, vector<8x64xf32>
    %51 = arith.index_cast %arg0 : i32 to index
    %c5 = arith.constant 5 : index
    %52 = memref.load %arg1[%51, %c5] : memref<4x8xi32, #tpu.memory_space<smem>>
    %c5_i32 = arith.constant 5 : i32
    %53 = vector.broadcast %c5_i32 : i32 to vector<8x64xi32>
    %54 = arith.cmpi eq, %3, %53 : vector<8x64xi32>
    %55 = vector.broadcast %52 : i32 to vector<8x64xi32>
    %56 = arith.cmpi eq, %4, %55 : vector<8x64xi32>
    %57 = arith.andi %54, %56 : vector<8x64xi1>
    %cst_7 = arith.constant 1.000000e+00 : f32
    %58 = vector.broadcast %cst_7 : f32 to vector<8x64xf32>
    %59 = arith.select %57, %58, %50 : vector<8x64xi1>, vector<8x64xf32>
    %60 = arith.index_cast %arg0 : i32 to index
    %c6 = arith.constant 6 : index
    %61 = memref.load %arg1[%60, %c6] : memref<4x8xi32, #tpu.memory_space<smem>>
    %c6_i32 = arith.constant 6 : i32
    %62 = vector.broadcast %c6_i32 : i32 to vector<8x64xi32>
    %63 = arith.cmpi eq, %3, %62 : vector<8x64xi32>
    %64 = vector.broadcast %61 : i32 to vector<8x64xi32>
    %65 = arith.cmpi eq, %4, %64 : vector<8x64xi32>
    %66 = arith.andi %63, %65 : vector<8x64xi1>
    %cst_8 = arith.constant 1.000000e+00 : f32
    %67 = vector.broadcast %cst_8 : f32 to vector<8x64xf32>
    %68 = arith.select %66, %67, %59 : vector<8x64xi1>, vector<8x64xf32>
    %69 = arith.index_cast %arg0 : i32 to index
    %c7 = arith.constant 7 : index
    %70 = memref.load %arg1[%69, %c7] : memref<4x8xi32, #tpu.memory_space<smem>>
    %c7_i32 = arith.constant 7 : i32
    %71 = vector.broadcast %c7_i32 : i32 to vector<8x64xi32>
    %72 = arith.cmpi eq, %3, %71 : vector<8x64xi32>
    %73 = vector.broadcast %70 : i32 to vector<8x64xi32>
    %74 = arith.cmpi eq, %4, %73 : vector<8x64xi32>
    %75 = arith.andi %72, %74 : vector<8x64xi1>
    %cst_9 = arith.constant 1.000000e+00 : f32
    %76 = vector.broadcast %cst_9 : f32 to vector<8x64xf32>
    %77 = arith.select %75, %76, %68 : vector<8x64xi1>, vector<8x64xf32>
    %78 = arith.truncf %77 : vector<8x64xf32> to vector<8x64xbf16>
    %c0_10 = arith.constant 0 : index
    %c0_11 = arith.constant 0 : index
    %79 = vector.load %arg2[%c0_10, %c0_11] : memref<64x32xbf16, #tpu.memory_space<vmem>>, vector<64x32xbf16>
    %cst_12 = arith.constant dense<0.000000e+00> : vector<8x32xf32>
    %80 = tpu.matmul %78, %79, %cst_12 {dimension_numbers = #tpu.dot_dimension_numbers<[1], [0], [0], [1], [0, 0, 1, 1], [], []>} : vector<8x64xbf16>, vector<64x32xbf16>, vector<8x32xf32> -> vector<8x32xf32>
    %c0_13 = arith.constant 0 : index
    %c0_14 = arith.constant 0 : index
    %81 = vector.load %arg14[%c0_13, %c0_14] : memref<8x128xf32, #tpu.memory_space<vmem>>, vector<8x128xf32>
    %82 = vector.extract_strided_slice %81 {offsets = [0, 0], sizes = [8, 32], strides = [1, 1]} : vector<8x128xf32> to vector<8x32xf32>
    %83 = vector.extract_strided_slice %81 {offsets = [0, 32], sizes = [8, 32], strides = [1, 1]} : vector<8x128xf32> to vector<8x32xf32>
    %84 = arith.truncf %80 : vector<8x32xf32> to vector<8x32xbf16>
    %c0_15 = arith.constant 0 : index
    %c0_16 = arith.constant 0 : index
    %85 = vector.load %arg3[%c0_15, %c0_16] : memref<32x128xbf16, #tpu.memory_space<vmem>>, vector<32x128xbf16>
    %cst_17 = arith.constant dense<0.000000e+00> : vector<8x128xf32>
    %86 = tpu.matmul %84, %85, %cst_17 {dimension_numbers = #tpu.dot_dimension_numbers<[1], [0], [0], [1], [0, 0, 1, 1], [], []>} : vector<8x32xbf16>, vector<32x128xbf16>, vector<8x128xf32> -> vector<8x128xf32>
    %87 = arith.truncf %82 : vector<8x32xf32> to vector<8x32xbf16>
    %c0_18 = arith.constant 0 : index
    %c0_19 = arith.constant 0 : index
    %88 = vector.load %arg4[%c0_18, %c0_19] : memref<32x128xbf16, #tpu.memory_space<vmem>>, vector<32x128xbf16>
    %cst_20 = arith.constant dense<0.000000e+00> : vector<8x128xf32>
    %89 = tpu.matmul %87, %88, %cst_20 {dimension_numbers = #tpu.dot_dimension_numbers<[1], [0], [0], [1], [0, 0, 1, 1], [], []>} : vector<8x32xbf16>, vector<32x128xbf16>, vector<8x128xf32> -> vector<8x128xf32>
    %90 = arith.addf %86, %89 : vector<8x128xf32>
    %c0_21 = arith.constant 0 : index
    %c0_22 = arith.constant 0 : index
    %91 = vector.load %arg5[%c0_21, %c0_22] : memref<1x128xf32, #tpu.memory_space<vmem>>, vector<1x128xf32>
    %92 = vector.broadcast %91 : vector<1x128xf32> to vector<8x128xf32>
    %93 = arith.addf %90, %92 : vector<8x128xf32>
    %94 = vector.extract_strided_slice %93 {offsets = [0, 0], sizes = [8, 96], strides = [1, 1]} : vector<8x128xf32> to vector<8x96xf32>
    %95 = arith.negf %94 : vector<8x96xf32>
    %96 = math.exp %95 : vector<8x96xf32>
    %cst_23 = arith.constant 1.000000e+00 : f32
    %97 = vector.broadcast %cst_23 : f32 to vector<8x96xf32>
    %98 = arith.addf %97, %96 : vector<8x96xf32>
    %99 = arith.divf %97, %98 : vector<8x96xf32>
    %100 = vector.extract_strided_slice %93 {offsets = [0, 96], sizes = [8, 32], strides = [1, 1]} : vector<8x128xf32> to vector<8x32xf32>
    %101 = math.tanh %100 : vector<8x32xf32>
    %102 = vector.extract_strided_slice %99 {offsets = [0, 0], sizes = [8, 32], strides = [1, 1]} : vector<8x96xf32> to vector<8x32xf32>
    %103 = vector.extract_strided_slice %99 {offsets = [0, 32], sizes = [8, 32], strides = [1, 1]} : vector<8x96xf32> to vector<8x32xf32>
    %104 = vector.extract_strided_slice %99 {offsets = [0, 64], sizes = [8, 32], strides = [1, 1]} : vector<8x96xf32> to vector<8x32xf32>
    %105 = arith.mulf %103, %83 : vector<8x32xf32>
    %106 = arith.mulf %102, %101 : vector<8x32xf32>
    %107 = arith.addf %105, %106 : vector<8x32xf32>
    %108 = math.tanh %107 : vector<8x32xf32>
    %109 = arith.mulf %104, %108 : vector<8x32xf32>
    %110 = vector.extract_strided_slice %81 {offsets = [0, 64], sizes = [8, 32], strides = [1, 1]} : vector<8x128xf32> to vector<8x32xf32>
    %111 = vector.extract_strided_slice %81 {offsets = [0, 96], sizes = [8, 32], strides = [1, 1]} : vector<8x128xf32> to vector<8x32xf32>
    %112 = arith.truncf %109 : vector<8x32xf32> to vector<8x32xbf16>
    %c0_24 = arith.constant 0 : index
    %c0_25 = arith.constant 0 : index
    %113 = vector.load %arg6[%c0_24, %c0_25] : memref<32x128xbf16, #tpu.memory_space<vmem>>, vector<32x128xbf16>
    %cst_26 = arith.constant dense<0.000000e+00> : vector<8x128xf32>
    %114 = tpu.matmul %112, %113, %cst_26 {dimension_numbers = #tpu.dot_dimension_numbers<[1], [0], [0], [1], [0, 0, 1, 1], [], []>} : vector<8x32xbf16>, vector<32x128xbf16>, vector<8x128xf32> -> vector<8x128xf32>
    %115 = arith.truncf %110 : vector<8x32xf32> to vector<8x32xbf16>
    %c0_27 = arith.constant 0 : index
    %c0_28 = arith.constant 0 : index
    %116 = vector.load %arg7[%c0_27, %c0_28] : memref<32x128xbf16, #tpu.memory_space<vmem>>, vector<32x128xbf16>
    %cst_29 = arith.constant dense<0.000000e+00> : vector<8x128xf32>
    %117 = tpu.matmul %115, %116, %cst_29 {dimension_numbers = #tpu.dot_dimension_numbers<[1], [0], [0], [1], [0, 0, 1, 1], [], []>} : vector<8x32xbf16>, vector<32x128xbf16>, vector<8x128xf32> -> vector<8x128xf32>
    %118 = arith.addf %114, %117 : vector<8x128xf32>
    %c0_30 = arith.constant 0 : index
    %c0_31 = arith.constant 0 : index
    %119 = vector.load %arg8[%c0_30, %c0_31] : memref<1x128xf32, #tpu.memory_space<vmem>>, vector<1x128xf32>
    %120 = vector.broadcast %119 : vector<1x128xf32> to vector<8x128xf32>
    %121 = arith.addf %118, %120 : vector<8x128xf32>
    %122 = vector.extract_strided_slice %121 {offsets = [0, 0], sizes = [8, 96], strides = [1, 1]} : vector<8x128xf32> to vector<8x96xf32>
    %123 = arith.negf %122 : vector<8x96xf32>
    %124 = math.exp %123 : vector<8x96xf32>
    %cst_32 = arith.constant 1.000000e+00 : f32
    %125 = vector.broadcast %cst_32 : f32 to vector<8x96xf32>
    %126 = arith.addf %125, %124 : vector<8x96xf32>
    %127 = arith.divf %125, %126 : vector<8x96xf32>
    %128 = vector.extract_strided_slice %121 {offsets = [0, 96], sizes = [8, 32], strides = [1, 1]} : vector<8x128xf32> to vector<8x32xf32>
    %129 = math.tanh %128 : vector<8x32xf32>
    %130 = vector.extract_strided_slice %127 {offsets = [0, 0], sizes = [8, 32], strides = [1, 1]} : vector<8x96xf32> to vector<8x32xf32>
    %131 = vector.extract_strided_slice %127 {offsets = [0, 32], sizes = [8, 32], strides = [1, 1]} : vector<8x96xf32> to vector<8x32xf32>
    %132 = vector.extract_strided_slice %127 {offsets = [0, 64], sizes = [8, 32], strides = [1, 1]} : vector<8x96xf32> to vector<8x32xf32>
    %133 = arith.mulf %131, %111 : vector<8x32xf32>
    %134 = arith.mulf %130, %129 : vector<8x32xf32>
    %135 = arith.addf %133, %134 : vector<8x32xf32>
    %136 = math.tanh %135 : vector<8x32xf32>
    %137 = arith.mulf %132, %136 : vector<8x32xf32>
    %138 = tpu.concatenate %109, %107, %137, %135 in 1 : vector<8x32xf32>, vector<8x32xf32>, vector<8x32xf32>, vector<8x32xf32> -> vector<8x128xf32>
    %c0_33 = arith.constant 0 : index
    %c0_34 = arith.constant 0 : index
    %139 = vector.load %arg14[%c0_33, %c0_34] : memref<8x128xf32, #tpu.memory_space<vmem>>, vector<8x128xf32>
    tpu.vector_store %arg14[%c0_33, %c0_34], %138 {strides = array<i32>} : memref<8x128xf32, #tpu.memory_space<vmem>>, vector<8x128xf32>,
    %c3_i32_35 = arith.constant 3 : i32
    %140 = arith.cmpi eq, %arg0, %c3_i32_35 : i32
    %141 = arith.extui %140 : i1 to i32
    %c0_i32_36 = arith.constant 0 : i32
    %142 = arith.cmpi ne, %141, %c0_i32_36 : i32
    scf.if %142 {
      %c0_47 = arith.constant 0 : index
      %c0_48 = arith.constant 0 : index
      %162 = vector.load %arg13[%c0_47, %c0_48] : memref<8x128xf32, #tpu.memory_space<vmem>>, vector<8x128xf32>
      tpu.vector_store %arg13[%c0_47, %c0_48], %138 {strides = array<i32>} : memref<8x128xf32, #tpu.memory_space<vmem>>, vector<8x128xf32>,
    } else {
    }
    %143 = arith.truncf %137 : vector<8x32xf32> to vector<8x32xbf16>
    %c0_37 = arith.constant 0 : index
    %c0_38 = arith.constant 0 : index
    %144 = vector.load %arg9[%c0_37, %c0_38] : memref<32x128xbf16, #tpu.memory_space<vmem>>, vector<32x128xbf16>
    %cst_39 = arith.constant dense<0.000000e+00> : vector<8x128xf32>
    %145 = tpu.matmul %143, %144, %cst_39 {dimension_numbers = #tpu.dot_dimension_numbers<[1], [0], [0], [1], [0, 0, 1, 1], [], []>} : vector<8x32xbf16>, vector<32x128xbf16>, vector<8x128xf32> -> vector<8x128xf32>
    %c0_40 = arith.constant 0 : index
    %c0_41 = arith.constant 0 : index
    %146 = vector.load %arg10[%c0_40, %c0_41] : memref<1x128xf32, #tpu.memory_space<vmem>>, vector<1x128xf32>
    %147 = vector.broadcast %146 : vector<1x128xf32> to vector<8x128xf32>
    %148 = arith.addf %145, %147 : vector<8x128xf32>
    %cst_42 = arith.constant dense<0xFF800000> : vector<8xf32>
    %149 = vector.multi_reduction <maximumf>, %148, %cst_42 [1] : vector<8x128xf32> to vector<8xf32>
    %150 = vector.shape_cast %149 : vector<8xf32> to vector<8x1xf32>
    %151 = vector.broadcast %150 : vector<8x1xf32> to vector<8x128xf32>
    %152 = arith.subf %148, %151 : vector<8x128xf32>
    %153 = math.exp %152 : vector<8x128xf32>
    %cst_43 = arith.constant dense<0.000000e+00> : vector<8xf32>
    %154 = vector.multi_reduction <add>, %153, %cst_43 [1] : vector<8x128xf32> to vector<8xf32>
    %155 = vector.shape_cast %154 : vector<8xf32> to vector<8x1xf32>
    %156 = math.log %155 : vector<8x1xf32>
    %157 = vector.broadcast %156 : vector<8x1xf32> to vector<8x128xf32>
    %158 = arith.subf %152, %157 : vector<8x128xf32>
    %c0_44 = arith.constant 0 : index
    %c0_45 = arith.constant 0 : index
    %c0_46 = arith.constant 0 : index
    %159 = vector.load %arg12[%c0_44, %c0_45, %c0_46] : memref<1x8x128xf32, #tpu.memory_space<vmem>>, vector<1x8x128xf32>
    %160 = vector.shape_cast %159 : vector<1x8x128xf32> to vector<8x128xf32>
    %161 = vector.shape_cast %158 : vector<8x128xf32> to vector<1x8x128xf32>
    tpu.vector_store %arg12[%c0_44, %c0_45, %c0_46], %161 {strides = array<i32>} : memref<1x8x128xf32, #tpu.memory_space<vmem>>, vector<1x8x128xf32>,
    return
  }
  func.func @transform_0(%arg0: i32, %arg1: memref<4x8xi32, #tpu.memory_space<smem>>) -> (i32, i32) {
    %c0_i32 = arith.constant 0 : i32
    %c0_i32_0 = arith.constant 0 : i32
    %c0_i32_1 = arith.constant 0 : i32
    return %c0_i32, %c0_i32_0 : i32, i32
  }
  func.func @transform_1(%arg0: i32, %arg1: memref<4x8xi32, #tpu.memory_space<smem>>) -> (i32, i32) {
    %c0_i32 = arith.constant 0 : i32
    %c0_i32_0 = arith.constant 0 : i32
    %c0_i32_1 = arith.constant 0 : i32
    return %c0_i32, %c0_i32_0 : i32, i32
  }
  func.func @transform_2(%arg0: i32, %arg1: memref<4x8xi32, #tpu.memory_space<smem>>) -> (i32, i32) {
    %c0_i32 = arith.constant 0 : i32
    %c0_i32_0 = arith.constant 0 : i32
    %c0_i32_1 = arith.constant 0 : i32
    return %c0_i32, %c0_i32_0 : i32, i32
  }
  func.func @transform_3(%arg0: i32, %arg1: memref<4x8xi32, #tpu.memory_space<smem>>) -> (i32, i32) {
    %c0_i32 = arith.constant 0 : i32
    %c0_i32_0 = arith.constant 0 : i32
    %c0_i32_1 = arith.constant 0 : i32
    return %c0_i32, %c0_i32_0 : i32, i32
  }
  func.func @transform_4(%arg0: i32, %arg1: memref<4x8xi32, #tpu.memory_space<smem>>) -> (i32, i32) {
    %c0_i32 = arith.constant 0 : i32
    %c0_i32_0 = arith.constant 0 : i32
    %c0_i32_1 = arith.constant 0 : i32
    return %c0_i32, %c0_i32_0 : i32, i32
  }
  func.func @transform_5(%arg0: i32, %arg1: memref<4x8xi32, #tpu.memory_space<smem>>) -> (i32, i32) {
    %c0_i32 = arith.constant 0 : i32
    %c0_i32_0 = arith.constant 0 : i32
    %c0_i32_1 = arith.constant 0 : i32
    return %c0_i32, %c0_i32_0 : i32, i32
  }
  func.func @transform_6(%arg0: i32, %arg1: memref<4x8xi32, #tpu.memory_space<smem>>) -> (i32, i32) {
    %c0_i32 = arith.constant 0 : i32
    %c0_i32_0 = arith.constant 0 : i32
    %c0_i32_1 = arith.constant 0 : i32
    return %c0_i32, %c0_i32_0 : i32, i32
  }
  func.func @transform_7(%arg0: i32, %arg1: memref<4x8xi32, #tpu.memory_space<smem>>) -> (i32, i32) {
    %c0_i32 = arith.constant 0 : i32
    %c0_i32_0 = arith.constant 0 : i32
    %c0_i32_1 = arith.constant 0 : i32
    return %c0_i32, %c0_i32_0 : i32, i32
  }
  func.func @transform_8(%arg0: i32, %arg1: memref<4x8xi32, #tpu.memory_space<smem>>) -> (i32, i32) {
    %c0_i32 = arith.constant 0 : i32
    %c0_i32_0 = arith.constant 0 : i32
    %c0_i32_1 = arith.constant 0 : i32
    return %c0_i32, %c0_i32_0 : i32, i32
  }
  func.func @transform_9(%arg0: i32, %arg1: memref<4x8xi32, #tpu.memory_space<smem>>) -> (i32, i32) {
    %c0_i32 = arith.constant 0 : i32
    %c0_i32_0 = arith.constant 0 : i32
    %c0_i32_1 = arith.constant 0 : i32
    return %c0_i32, %c0_i32_0 : i32, i32
  }
  func.func @transform_10(%arg0: i32, %arg1: memref<4x8xi32, #tpu.memory_space<smem>>) -> (i32, i32, i32) {
    %c0_i32 = arith.constant 0 : i32
    %c0_i32_0 = arith.constant 0 : i32
    %c0_i32_1 = arith.constant 0 : i32
    return %arg0, %c0_i32, %c0_i32_0 : i32, i32, i32
  }
  func.func @transform_11(%arg0: i32, %arg1: memref<4x8xi32, #tpu.memory_space<smem>>) -> (i32, i32) {
    %c0_i32 = arith.constant 0 : i32
    %c0_i32_0 = arith.constant 0 : i32
    %c0_i32_1 = arith.constant 0 : i32
    return %c0_i32, %c0_i32_0 : i32, i32
  }
}

</mosaic_0001>

<llo_original>
// kernel: decoder_decode.1
$region0: #{decoder_decode.1}
  #allocation0 [shape = 'u32[]', space=smem, size = 0x4, offset = 0x4, fixed_abs, tag = 'smem constant byte address 0x4 - core index']
  #allocation1 [shape = 'u32[144,128]{1,0:T(1,128)}', space=vmem, size = 0x12000, scoped, tag = 'internal scratch']
  #allocation2 [shape = 'f32[8,128]{1,0:T(8,128)}', space=vmem, size = 0x1000, scoped, tag = 'scratch operand']
  #allocation3 [shape = 's32[1]{0}', space=sflag, size = 0x4, scoped, tag = 'scoped memory for decoder_decode.1']
  #allocation4 [shape = 'u8[2048]{0}', space=smem, size = 0x800, scoped, tag = 'prefetched SMEM operand 0']
  %s0 = inlined_call_operand.vmem [shape: s32[4,8], index: 0, kind: input, shape index: {}]
  %s1 = inlined_call_operand.vmem [shape: bf16[64,32], index: 1, kind: input, shape index: {}]
  %s2 = inlined_call_operand.vmem [shape: bf16[32,128], index: 2, kind: input, shape index: {}]
  %s3 = inlined_call_operand.vmem [shape: bf16[32,128], index: 3, kind: input, shape index: {}]
  %s4 = inlined_call_operand.vmem [shape: f32[1,128], index: 4, kind: input, shape index: {}]
  %s5 = inlined_call_operand.vmem [shape: bf16[32,128], index: 5, kind: input, shape index: {}]
  %s6 = inlined_call_operand.vmem [shape: bf16[32,128], index: 6, kind: input, shape index: {}]
  %s7 = inlined_call_operand.vmem [shape: f32[1,128], index: 7, kind: input, shape index: {}]
  %s8 = inlined_call_operand.vmem [shape: bf16[32,128], index: 8, kind: input, shape index: {}]
  %s9 = inlined_call_operand.vmem [shape: f32[1,128], index: 9, kind: input, shape index: {}]
  %s10 = inlined_call_operand.vmem [shape: f32[8,128], index: 10, kind: input, shape index: {}]
  %s11 = inlined_call_operand.hbm [shape: f32[4,8,128], index: 11, kind: output, shape index: {0}]
  %s12 = inlined_call_operand.vmem [shape: f32[8,128], index: 12, kind: output, shape index: {1}]
  %13 = xla_tuple %s11, %s12
  %s14 = sld [smem:[#allocation0]]
  $region89: #{decoder_decode.1} parent=0
    _
  %s16 = ssub.s32 1, %s14
  %s17 = scalar_select 0, %s16, %s14
  %s18 = sshll.u32 %s0, 4
  %s19 = int_to_ptr.vmem [resolvable:$true] %s18
  %21 = dma.vmem_to_smem %s19, 64, [#allocation4], [#allocation3]
  %22 = dma.done [#allocation3], 64
  %23 = sfence
  $region1: #{decoder_decode.1} parent=0
    #allocation5 [shape = 'u8[8192]{0}', space=vmem, size = 0x2000, scoped, tag = 'output window, operand 0']
    #allocation6 [shape = 's32[2]{0}', space=sflag, size = 0x8, scoped, tag = 'scoped memory for decoder_decode.1']
    %24 = vsyncpa [#allocation6], 0
    %s25 = scalar_lea.sflag [#allocation6], 1
    %26 = vsyncpa %s25, 0
    loop: start=0, step=1, limit=6
    $region2: #{decoder_decode.1} parent=1 // loop_pre_header
      _
    $region3: #{decoder_decode.1} parent=1 // loop_header
      %s28 = sphi 0, %s32
      %p29 = scmp.ge.s32.totalorder %s28, 6
      %s36 = sphi 0, %s36
      %s38 = sphi 0, %s36
      %s39 = sphi 0, %s38
      %s53 = sphi 0, %s39
      %s57 = sphi 0, %s57
      %s59 = sphi 0, %s57
      %s60 = sphi 0, %s59
      %s74 = sphi 0, %s60
      %s78 = sphi 0, %s78
      %s80 = sphi 0, %s78
      %s81 = sphi 0, %s80
      %s95 = sphi 0, %s81
      %s99 = sphi 0, %s99
      %s101 = sphi 0, %s99
      %s102 = sphi 0, %s101
      %s116 = sphi 0, %s102
      %s120 = sphi 0, %s120
      %s122 = sphi 0, %s120
      %s123 = sphi 0, %s122
      %s137 = sphi 0, %s123
      %s141 = sphi 0, %s141
      %s143 = sphi 0, %s141
      %s144 = sphi 0, %s143
      %s158 = sphi 0, %s144
      %s162 = sphi 0, %s162
      %s164 = sphi 0, %s162
      %s165 = sphi 0, %s164
      %s179 = sphi 0, %s165
      %s183 = sphi 0, %s183
      %s185 = sphi 0, %s183
      %s186 = sphi 0, %s185
      %s200 = sphi 0, %s186
      %s204 = sphi 0, %s204
      %s206 = sphi 0, %s204
      %s207 = sphi 0, %s206
      %s221 = sphi 0, %s207
      %s225 = sphi 0, %s225
      %s227 = sphi 0, %s225
      %s228 = sphi 0, %s227
      %s242 = sphi 0, %s228
      %s248 = sphi 0, %s250
      %s251 = sphi 0, %s248
      %s252 = sphi 0, %s251
      %s268 = sphi 0, %s252
      %s272 = sphi 0, %s272
      %s274 = sphi 0, %s272
      %s275 = sphi 0, %s274
      %s289 = sphi 0, %s275
    $region4: #{decoder_decode.1} parent=1 // loop_header_branch
      %31 = sbr.rel (%p29) target = $region8
    $region5: #{decoder_decode.1} parent=1 // loop_body
      %s33 = ssub.s32 %s28, 1
      %s34 = ssub.s32 %s28, 2
      %s35 = sadd.s32 %s28, 1
      %s37 = sadd.s32 %s36, 1
      %p40 = scmp.eq.s32.totalorder %s28, 3
      %p41 = scmp.ne.s32.totalorder %s36, %s38
      %p42 = scmp.eq.s32.totalorder %s28, 0
      %p43 = por %p41, %p42
      %p44 = scmp.ne.s32.totalorder %s36, %s38
      %p45 = scmp.eq.s32.totalorder %s33, 3
      %p46 = por %p44, %p45
      %p47 = scmp.ne.s32.totalorder %s38, %s39
      %p48 = scmp.eq.s32.totalorder %s33, 0
      %p49 = por %p47, %p48
      %p50 = scmp.ne.s32.totalorder %s38, %s39
      %p51 = scmp.eq.s32.totalorder %s34, 3
      %p52 = por %p50, %p51
      %p54 = scmp.ne.s32.totalorder %s39, %s53
      %p55 = scmp.eq.s32.totalorder %s34, 0
      %p56 = por %p54, %p55
      %s58 = sadd.s32 %s57, 1
      %p61 = scmp.eq.s32.totalorder %s28, 3
      %p62 = scmp.ne.s32.totalorder %s57, %s59
      %p63 = scmp.eq.s32.totalorder %s28, 0
      %p64 = por %p62, %p63
      %p65 = scmp.ne.s32.totalorder %s57, %s59
      %p66 = scmp.eq.s32.totalorder %s33, 3
      %p67 = por %p65, %p66
      %p68 = scmp.ne.s32.totalorder %s59, %s60
      %p69 = scmp.eq.s32.totalorder %s33, 0
      %p70 = por %p68, %p69
      %p71 = scmp.ne.s32.totalorder %s59, %s60
      %p72 = scmp.eq.s32.totalorder %s34, 3
      %p73 = por %p71, %p72
      %p75 = scmp.ne.s32.totalorder %s60, %s74
      %p76 = scmp.eq.s32.totalorder %s34, 0
      %p77 = por %p75, %p76
      %s79 = sadd.s32 %s78, 1
      %p82 = scmp.eq.s32.totalorder %s28, 3
      %p83 = scmp.ne.s32.totalorder %s78, %s80
      %p84 = scmp.eq.s32.totalorder %s28, 0
      %p85 = por %p83, %p84
      %p86 = scmp.ne.s32.totalorder %s78, %s80
      %p87 = scmp.eq.s32.totalorder %s33, 3
      %p88 = por %p86, %p87
      %p89 = scmp.ne.s32.totalorder %s80, %s81
      %p90 = scmp.eq.s32.totalorder %s33, 0
      %p91 = por %p89, %p90
      %p92 = scmp.ne.s32.totalorder %s80, %s81
      %p93 = scmp.eq.s32.totalorder %s34, 3
      %p94 = por %p92, %p93
      %p96 = scmp.ne.s32.totalorder %s81, %s95
      %p97 = scmp.eq.s32.totalorder %s34, 0
      %p98 = por %p96, %p97
      %s100 = sadd.s32 %s99, 1
      %p103 = scmp.eq.s32.totalorder %s28, 3
      %p104 = scmp.ne.s32.totalorder %s99, %s101
      %p105 = scmp.eq.s32.totalorder %s28, 0
      %p106 = por %p104, %p105
      %p107 = scmp.ne.s32.totalorder %s99, %s101
      %p108 = scmp.eq.s32.totalorder %s33, 3
      %p109 = por %p107, %p108
      %p110 = scmp.ne.s32.totalorder %s101, %s102
      %p111 = scmp.eq.s32.totalorder %s33, 0
      %p112 = por %p110, %p111
      %p113 = scmp.ne.s32.totalorder %s101, %s102
      %p114 = scmp.eq.s32.totalorder %s34, 3
      %p115 = por %p113, %p114
      %p117 = scmp.ne.s32.totalorder %s102, %s116
      %p118 = scmp.eq.s32.totalorder %s34, 0
      %p119 = por %p117, %p118
      %s121 = sadd.s32 %s120, 1
      %p124 = scmp.eq.s32.totalorder %s28, 3
      %p125 = scmp.ne.s32.totalorder %s120, %s122
      %p126 = scmp.eq.s32.totalorder %s28, 0
      %p127 = por %p125, %p126
      %p128 = scmp.ne.s32.totalorder %s120, %s122
      %p129 = scmp.eq.s32.totalorder %s33, 3
      %p130 = por %p128, %p129
      %p131 = scmp.ne.s32.totalorder %s122, %s123
      %p132 = scmp.eq.s32.totalorder %s33, 0
      %p133 = por %p131, %p132
      %p134 = scmp.ne.s32.totalorder %s122, %s123
      %p135 = scmp.eq.s32.totalorder %s34, 3
      %p136 = por %p134, %p135
      %p138 = scmp.ne.s32.totalorder %s123, %s137
      %p139 = scmp.eq.s32.totalorder %s34, 0
      %p140 = por %p138, %p139
      %s142 = sadd.s32 %s141, 1
      %p145 = scmp.eq.s32.totalorder %s28, 3
      %p146 = scmp.ne.s32.totalorder %s141, %s143
      %p147 = scmp.eq.s32.totalorder %s28, 0
      %p148 = por %p146, %p147
      %p149 = scmp.ne.s32.totalorder %s141, %s143
      %p150 = scmp.eq.s32.totalorder %s33, 3
      %p151 = por %p149, %p150
      %p152 = scmp.ne.s32.totalorder %s143, %s144
      %p153 = scmp.eq.s32.totalorder %s33, 0
      %p154 = por %p152, %p153
      %p155 = scmp.ne.s32.totalorder %s143, %s144
      %p156 = scmp.eq.s32.totalorder %s34, 3
      %p157 = por %p155, %p156
      %p159 = scmp.ne.s32.totalorder %s144, %s158
      %p160 = scmp.eq.s32.totalorder %s34, 0
      %p161 = por %p159, %p160
      %s163 = sadd.s32 %s162, 1
      %p166 = scmp.eq.s32.totalorder %s28, 3
      %p167 = scmp.ne.s32.totalorder %s162, %s164
      %p168 = scmp.eq.s32.totalorder %s28, 0
      %p169 = por %p167, %p168
      %p170 = scmp.ne.s32.totalorder %s162, %s164
      %p171 = scmp.eq.s32.totalorder %s33, 3
      %p172 = por %p170, %p171
      %p173 = scmp.ne.s32.totalorder %s164, %s165
      %p174 = scmp.eq.s32.totalorder %s33, 0
      %p175 = por %p173, %p174
      %p176 = scmp.ne.s32.totalorder %s164, %s165
      %p177 = scmp.eq.s32.totalorder %s34, 3
      %p178 = por %p176, %p177
      %p180 = scmp.ne.s32.totalorder %s165, %s179
      %p181 = scmp.eq.s32.totalorder %s34, 0
      %p182 = por %p180, %p181
      %s184 = sadd.s32 %s183, 1
      %p187 = scmp.eq.s32.totalorder %s28, 3
      %p188 = scmp.ne.s32.totalorder %s183, %s185
      %p189 = scmp.eq.s32.totalorder %s28, 0
      %p190 = por %p188, %p189
      %p191 = scmp.ne.s32.totalorder %s183, %s185
      %p192 = scmp.eq.s32.totalorder %s33, 3
      %p193 = por %p191, %p192
      %p194 = scmp.ne.s32.totalorder %s185, %s186
      %p195 = scmp.eq.s32.totalorder %s33, 0
      %p196 = por %p194, %p195
      %p197 = scmp.ne.s32.totalorder %s185, %s186
      %p198 = scmp.eq.s32.totalorder %s34, 3
      %p199 = por %p197, %p198
      %p201 = scmp.ne.s32.totalorder %s186, %s200
      %p202 = scmp.eq.s32.totalorder %s34, 0
      %p203 = por %p201, %p202
      %s205 = sadd.s32 %s204, 1
      %p208 = scmp.eq.s32.totalorder %s28, 3
      %p209 = scmp.ne.s32.totalorder %s204, %s206
      %p210 = scmp.eq.s32.totalorder %s28, 0
      %p211 = por %p209, %p210
      %p212 = scmp.ne.s32.totalorder %s204, %s206
      %p213 = scmp.eq.s32.totalorder %s33, 3
      %p214 = por %p212, %p213
      %p215 = scmp.ne.s32.totalorder %s206, %s207
      %p216 = scmp.eq.s32.totalorder %s33, 0
      %p217 = por %p215, %p216
      %p218 = scmp.ne.s32.totalorder %s206, %s207
      %p219 = scmp.eq.s32.totalorder %s34, 3
      %p220 = por %p218, %p219
      %p222 = scmp.ne.s32.totalorder %s207, %s221
      %p223 = scmp.eq.s32.totalorder %s34, 0
      %p224 = por %p222, %p223
      %s226 = sadd.s32 %s225, 1
      %p229 = scmp.eq.s32.totalorder %s28, 3
      %p230 = scmp.ne.s32.totalorder %s225, %s227
      %p231 = scmp.eq.s32.totalorder %s28, 0
      %p232 = por %p230, %p231
      %p233 = scmp.ne.s32.totalorder %s225, %s227
      %p234 = scmp.eq.s32.totalorder %s33, 3
      %p235 = por %p233, %p234
      %p236 = scmp.ne.s32.totalorder %s227, %s228
      %p237 = scmp.eq.s32.totalorder %s33, 0
      %p238 = por %p236, %p237
      %p239 = scmp.ne.s32.totalorder %s227, %s228
      %p240 = scmp.eq.s32.totalorder %s34, 3
      %p241 = por %p239, %p240
      %p243 = scmp.ne.s32.totalorder %s228, %s242
      %p244 = scmp.eq.s32.totalorder %s34, 0
      %p245 = por %p243, %p244
      %s246 = ssub.s32 %s28, %s35
      %p247 = scmp.eq.s32.totalorder %s246, 0
      %s249 = sadd.s32 %s248, 1
      %s250 = scalar_select %p247, %s248, %s249
      %p253 = pneg %p247
      %p254 = scmp.eq.s32.totalorder %s28, 3
      %p255 = por %p253, %p254
      %p256 = scmp.ne.s32.totalorder %s248, %s251
      %p257 = scmp.eq.s32.totalorder %s28, 0
      %p258 = por %p256, %p257
      %p259 = scmp.ne.s32.totalorder %s248, %s251
      %p260 = scmp.eq.s32.totalorder %s33, 3
      %p261 = por %p259, %p260
      %p262 = scmp.ne.s32.totalorder %s251, %s252
      %p263 = scmp.eq.s32.totalorder %s33, 0
      %p264 = por %p262, %p263
      %p265 = scmp.ne.s32.totalorder %s251, %s252
      %p266 = scmp.eq.s32.totalorder %s34, 3
      %p267 = por %p265, %p266
      %p269 = scmp.ne.s32.totalorder %s252, %s268
      %p270 = scmp.eq.s32.totalorder %s34, 0
      %p271 = por %p269, %p270
      %s273 = sadd.s32 %s272, 1
      %p276 = scmp.eq.s32.totalorder %s28, 3
      %p277 = scmp.ne.s32.totalorder %s272, %s274
      %p278 = scmp.eq.s32.totalorder %s28, 0
      %p279 = por %p277, %p278
      %p280 = scmp.ne.s32.totalorder %s272, %s274
      %p281 = scmp.eq.s32.totalorder %s33, 3
      %p282 = por %p280, %p281
      %p283 = scmp.ne.s32.totalorder %s274, %s275
      %p284 = scmp.eq.s32.totalorder %s33, 0
      %p285 = por %p283, %p284
      %p286 = scmp.ne.s32.totalorder %s274, %s275
      %p287 = scmp.eq.s32.totalorder %s34, 3
      %p288 = por %p286, %p287
      %p290 = scmp.ne.s32.totalorder %s275, %s289
      %p291 = scmp.eq.s32.totalorder %s34, 0
      %p292 = por %p290, %p291
      %p293 = scmp.le.s32.totalorder 1, %s28
      %p294 = scmp.lt.s32.totalorder %s28, 5
      %p295 = pnand %p293, %p294
      %p296 = pneg %p295
      // Predicated region
      $region9: #{decoder_decode.1} parent=5 // pred_check
        _
      $region10: #{decoder_decode.1} parent=5 // pred_check_branch
        %298 = sbr.rel (%p295) target = $region12
      $region11: #{decoder_decode.1} parent=5 // pred_region
        %s299 = ssub.s32 %s28, 1
        // Predicated region
        $region13: #{decoder_decode.1} parent=11 // pred_check
          %p300 = pneg %p49
        $region14: #{decoder_decode.1} parent=11 // pred_check_branch
          %302 = sbr.rel (%p300) target = $region16
        $region15: #{decoder_decode.1} parent=11 // pred_region
          _
        $region16: #{decoder_decode.1} parent=11 // pred_fallthru
          _
        // Predicated region
        $region17: #{decoder_decode.1} parent=11 // pred_check
          %p303 = pneg %p70
        $region18: #{decoder_decode.1} parent=11 // pred_check_branch
          %305 = sbr.rel (%p303) target = $region20
        $region19: #{decoder_decode.1} parent=11 // pred_region
          _
        $region20: #{decoder_decode.1} parent=11 // pred_fallthru
          _
        // Predicated region
        $region21: #{decoder_decode.1} parent=11 // pred_check
          %p306 = pneg %p91
        $region22: #{decoder_decode.1} parent=11 // pred_check_branch
          %308 = sbr.rel (%p306) target = $region24
        $region23: #{decoder_decode.1} parent=11 // pred_region
          _
        $region24: #{decoder_decode.1} parent=11 // pred_fallthru
          _
        // Predicated region
        $region25: #{decoder_decode.1} parent=11 // pred_check
          %p309 = pneg %p112
        $region26: #{decoder_decode.1} parent=11 // pred_check_branch
          %311 = sbr.rel (%p309) target = $region28
        $region27: #{decoder_decode.1} parent=11 // pred_region
          _
        $region28: #{decoder_decode.1} parent=11 // pred_fallthru
          _
        // Predicated region
        $region29: #{decoder_decode.1} parent=11 // pred_check
          %p312 = pneg %p133
        $region30: #{decoder_decode.1} parent=11 // pred_check_branch
          %314 = sbr.rel (%p312) target = $region32
        $region31: #{decoder_decode.1} parent=11 // pred_region
          _
        $region32: #{decoder_decode.1} parent=11 // pred_fallthru
          _
        // Predicated region
        $region33: #{decoder_decode.1} parent=11 // pred_check
          %p315 = pneg %p154
        $region34: #{decoder_decode.1} parent=11 // pred_check_branch
          %317 = sbr.rel (%p315) target = $region36
        $region35: #{decoder_decode.1} parent=11 // pred_region
          _
        $region36: #{decoder_decode.1} parent=11 // pred_fallthru
          _
        // Predicated region
        $region37: #{decoder_decode.1} parent=11 // pred_check
          %p318 = pneg %p175
        $region38: #{decoder_decode.1} parent=11 // pred_check_branch
          %320 = sbr.rel (%p318) target = $region40
        $region39: #{decoder_decode.1} parent=11 // pred_region
          _
        $region40: #{decoder_decode.1} parent=11 // pred_fallthru
          _
        // Predicated region
        $region41: #{decoder_decode.1} parent=11 // pred_check
          %p321 = pneg %p196
        $region42: #{decoder_decode.1} parent=11 // pred_check_branch
          %323 = sbr.rel (%p321) target = $region44
        $region43: #{decoder_decode.1} parent=11 // pred_region
          _
        $region44: #{decoder_decode.1} parent=11 // pred_fallthru
          _
        // Predicated region
        $region45: #{decoder_decode.1} parent=11 // pred_check
          %p324 = pneg %p217
        $region46: #{decoder_decode.1} parent=11 // pred_check_branch
          %326 = sbr.rel (%p324) target = $region48
        $region47: #{decoder_decode.1} parent=11 // pred_region
          _
        $region48: #{decoder_decode.1} parent=11 // pred_fallthru
          _
        // Predicated region
        $region49: #{decoder_decode.1} parent=11 // pred_check
          %p327 = pneg %p238
        $region50: #{decoder_decode.1} parent=11 // pred_check_branch
          %329 = sbr.rel (%p327) target = $region52
        $region51: #{decoder_decode.1} parent=11 // pred_region
          _
        $region52: #{decoder_decode.1} parent=11 // pred_fallthru
          _
      $region12: #{decoder_decode.1} parent=5 // pred_fallthru
        _
      %p330 = scmp.lt.s32.totalorder %s28, 4
      // Predicated region
      $region53: #{decoder_decode.1} parent=5 // pred_check
        %p331 = pneg %p330
      $region54: #{decoder_decode.1} parent=5 // pred_check_branch
        %333 = sbr.rel (%p331) target = $region56
      $region55: #{decoder_decode.1} parent=5 // pred_region
        _
      $region56: #{decoder_decode.1} parent=5 // pred_fallthru
        _
      %p334 = scmp.le.s32.totalorder 1, %s28
      %p335 = scmp.lt.s32.totalorder %s28, 5
      %p336 = pnand %p334, %p335
      %p337 = pneg %p336
      // Predicated region
      $region57: #{decoder_decode.1} parent=5 // pred_check
        _
      $region58: #{decoder_decode.1} parent=5 // pred_check_branch
        %339 = sbr.rel (%p336) target = $region60
      $region59: #{decoder_decode.1} parent=5 // pred_region
        %s340 = ssub.s32 %s28, 1
        %p341 = pneg %p49
        %p342 = pneg %p46
        %p343 = pneg %p70
        %p344 = pneg %p67
        %p345 = pneg %p91
        %p346 = pneg %p88
        %p347 = pneg %p112
        %p348 = pneg %p109
        %p349 = pneg %p133
        %p350 = pneg %p130
        %p351 = pneg %p154
        %p352 = pneg %p151
        %p353 = pneg %p175
        %p354 = pneg %p172
        %p355 = pneg %p196
        %p356 = pneg %p193
        %p357 = pneg %p217
        %p358 = pneg %p214
        %p359 = pneg %p238
        %p360 = pneg %p235
        %p361 = pneg %p264
        %p362 = pneg %p261
        %s363 = sand.u32 %s251, 1
        %s364 = scalar_lea.sflag [#allocation6], %s363
        %s365 = sand.u32 %s251, 1
        %s366 = smul.addr %s365, 8
        %s367 = scalar_lea.vmem [#allocation5], %s366
        %p368 = pneg %p285
        %p369 = pneg %p282
        %p371 = scmp.eq.s32.totalorder %s33, 0
        // Predicated region
        $region61: #{decoder_decode.1} parent=59 // pred_check
          %p372 = pneg %p371
        $region62: #{decoder_decode.1} parent=59 // pred_check_branch
          %374 = sbr.rel (%p372) target = $region64
        $region63: #{decoder_decode.1} parent=59 // pred_region
          %v375 = vld [vmem:[%s10] sm:$0xff]
          %376 = vst [vmem:[#allocation2] sm:$0xff] %v375
        $region64: #{decoder_decode.1} parent=59 // pred_fallthru
          _
        %v377 = vlaneseq
        %v378 = vshrl.u32 %v377, 7
        %v379 = vlaneseq
        %v380 = vand.u32 %v379, 127
        %s381 = smul.u32 %s33, 128
        %s382 = sld [smem:[#allocation4 + %s381]]
        %vm383 = vcmp.eq.s32.totalorder %v378, 0
        %v384 = vstv %s382
        %vm385 = vcmp.eq.s32.totalorder %v380, %v384
        %vm386 = vmand %vm383, %vm385
        %v387 = vsel %vm386, 1.0, 0.0
        %s388 = sadd.s32 %s381, 1
        %s389 = sld [smem:[#allocation4 + %s388]]
        %vm390 = vcmp.eq.s32.totalorder %v378, 1
        %v391 = vstv %s389
        %vm392 = vcmp.eq.s32.totalorder %v380, %v391
        %vm393 = vmand %vm390, %vm392
        %v394 = vsel %vm393, 1.0, %v387
        %s395 = sadd.s32 %s381, 2
        %s396 = sld [smem:[#allocation4 + %s395]]
        %vm397 = vcmp.eq.s32.totalorder %v378, 2
        %v398 = vstv %s396
        %vm399 = vcmp.eq.s32.totalorder %v380, %v398
        %vm400 = vmand %vm397, %vm399
        %v401 = vsel %vm400, 1.0, %v394
        %s402 = sadd.s32 %s381, 3
        %s403 = sld [smem:[#allocation4 + %s402]]
        %vm404 = vcmp.eq.s32.totalorder %v378, 3
        %v405 = vstv %s403
        %vm406 = vcmp.eq.s32.totalorder %v380, %v405
        %vm407 = vmand %vm404, %vm406
        %v408 = vsel %vm407, 1.0, %v401
        %s409 = sadd.s32 %s381, 4
        %s410 = sld [smem:[#allocation4 + %s409]]
        %vm411 = vcmp.eq.s32.totalorder %v378, 4
        %v412 = vstv %s410
        %vm413 = vcmp.eq.s32.totalorder %v380, %v412
        %vm414 = vmand %vm411, %vm413
        %v415 = vsel %vm414, 1.0, %v408
        %s416 = sadd.s32 %s381, 5
        %s417 = sld [smem:[#allocation4 + %s416]]
        %vm418 = vcmp.eq.s32.totalorder %v378, 5
        %v419 = vstv %s417
        %vm420 = vcmp.eq.s32.totalorder %v380, %v419
        %vm421 = vmand %vm418, %vm420
        %v422 = vsel %vm421, 1.0, %v415
        %s423 = sadd.s32 %s381, 6
        %s424 = sld [smem:[#allocation4 + %s423]]
        %vm425 = vcmp.eq.s32.totalorder %v378, 6
        %v426 = vstv %s424
        %vm427 = vcmp.eq.s32.totalorder %v380, %v426
        %vm428 = vmand %vm425, %vm427
        %v429 = vsel %vm428, 1.0, %v422
        %s430 = sadd.s32 %s381, 7
        %s431 = sld [smem:[#allocation4 + %s430]]
        %vm432 = vcmp.eq.s32.totalorder %v378, 7
        %v433 = vstv %s431
        %vm434 = vcmp.eq.s32.totalorder %v380, %v433
        %vm435 = vmand %vm432, %vm434
        %v436 = vsel %vm435, 1.0, %v429
        %v437 = vpack.c.bf16 %v436, %v436
        %v438 = vld [vmem:[%s1] sm:$0xf]
        %v439 = vld [vmem:[%s1 + $0x4] sm:$0xf]
        %v440 = vld [vmem:[%s1 + $0x8] sm:$0xf]
        %v441 = vld [vmem:[%s1 + $0xc] sm:$0xf]
        %v442 = vld [vmem:[%s1 + $0x10] sm:$0xf]
        %v443 = vld [vmem:[%s1 + $0x14] sm:$0xf]
        %v444 = vld [vmem:[%s1 + $0x18] sm:$0xf]
        %v445 = vld [vmem:[%s1 + $0x1c] sm:$0xf]
        %v454 = vunpack.c.l.b16 %v438
        %v455 = vunpack.c.l.b16 %v439
        %v456 = vunpack.c.l.b16 %v440
        %v457 = vunpack.c.l.b16 %v441
        %v458 = vunpack.c.l.b16 %v442
        %v459 = vunpack.c.l.b16 %v443
        %v460 = vunpack.c.l.b16 %v444
        %v461 = vunpack.c.l.b16 %v445
        %v462 = vpack.c.b16 %v455, %v454
        %v463 = vpack.c.b16 %v457, %v456
        %v464 = vpack.c.b16 %v459, %v458
        %v465 = vpack.c.b16 %v461, %v460
        %vm470 = vcmask 523264
        %v472 = vsel %vm470, %v437, 0
        %474 = vmatprep.subr.bf16.mxu0 0
        %475 = vmatpush1.bf16.msra.mxu0 %v462
        %476 = vmatprep.subr.bf16.mxu0 0
        %477 = vmatpush1.bf16.msra.mxu0 %v463
        %478 = vmatprep.subr.bf16.mxu0 0
        %479 = vmatpush1.bf16.msra.mxu0 %v464
        %480 = vmatprep.subr.bf16.mxu0 0
        %481 = vmatpush1.bf16.msra.mxu0 %v465
        %482 = vmatprep.subr.bf16.mxu0 0
        %483 = vmatpush1.bf16.msra.mxu0 0
        %484 = vmatprep.subr.bf16.mxu0 0
        %485 = vmatpush1.bf16.msra.mxu0 0
        %486 = vmatprep.subr.bf16.mxu0 0
        %487 = vmatpush1.bf16.msra.mxu0 0
        %488 = vmatprep.subr.bf16.mxu0 0
        %489 = vmatpush1.bf16.msra.mxu0 0
        %490 = vmatprep.subr.bf16.mxu0 0
        %491 = vmatpush1.bf16.msra.mxu0 0
        %492 = vmatprep.subr.bf16.mxu0 0
        %493 = vmatpush1.bf16.msra.mxu0 0
        %494 = vmatprep.subr.bf16.mxu0 0
        %495 = vmatpush1.bf16.msra.mxu0 0
        %496 = vmatprep.subr.bf16.mxu0 0
        %497 = vmatpush1.bf16.msra.mxu0 0
        %498 = vmatprep.subr.bf16.mxu0 0
        %499 = vmatpush1.bf16.msra.mxu0 0
        %500 = vmatprep.subr.bf16.mxu0 0
        %501 = vmatpush1.bf16.msra.mxu0 0
        %502 = vmatprep.subr.bf16.mxu0 0
        %503 = vmatpush1.bf16.msra.mxu0 0
        %504 = vmatprep.subr.bf16.mxu0 0
        %505 = vmatpush1.bf16.msra.mxu0 0
        %506 = vmatprep.mubr.bf16.mxu0 0
        %507 = vmatmul.mubr.bf16.gmra.mrb[0].mxu0 %v472
        %v508 = vpop.f32.mrb[0].mxu0
        %v509 = vadd.f32 0.0, %v508
        %v510 = vpop.f32.mrb[0].mxu0
        %v511 = vpop.f32.mrb[0].mxu0
        %v512 = vpop.f32.mrb[0].mxu0
        %513 = vdwg.mxu0
        %v514 = vld [vmem:[#allocation2] sm:$0xff]
        %v515 = vpack.c.bf16 %v509, %v509
        %v516 = vld [vmem:[%s2] sm:$0xf]
        %v517 = vld [vmem:[%s2 + $0x4] sm:$0xf]
        %v518 = vld [vmem:[%s2 + $0x8] sm:$0xf]
        %v519 = vld [vmem:[%s2 + $0xc] sm:$0xf]
        %v520 = vpack.c.bf16 %v514, %v514
        %v521 = vld [vmem:[%s3] sm:$0xf]
        %v522 = vld [vmem:[%s3 + $0x4] sm:$0xf]
        %v523 = vld [vmem:[%s3 + $0x8] sm:$0xf]
        %v524 = vld [vmem:[%s3 + $0xc] sm:$0xf]
        %v529 = vunpack.c.l.b16 %v521
        %v530 = vunpack.c.l.b16 %v522
        %v531 = vunpack.c.l.b16 %v523
        %v532 = vunpack.c.l.b16 %v524
        %v533 = vpack.c.b16 %v530, %v529
        %v534 = vpack.c.b16 %v532, %v531
        %vm537 = vcmask 261120
        %v539 = vsel %vm537, %v520, 0
        %541 = vmatprep.subr.bf16.mxu0 0
        %542 = vmatpush1.bf16.msra.mxu0 %v533
        %543 = vmatprep.subr.bf16.mxu0 0
        %544 = vmatpush1.bf16.msra.mxu0 %v534
        %545 = vmatprep.subr.bf16.mxu0 0
        %546 = vmatpush1.bf16.msra.mxu0 0
        %547 = vmatprep.subr.bf16.mxu0 0
        %548 = vmatpush1.bf16.msra.mxu0 0
        %549 = vmatprep.subr.bf16.mxu0 0
        %550 = vmatpush1.bf16.msra.mxu0 0
        %551 = vmatprep.subr.bf16.mxu0 0
        %552 = vmatpush1.bf16.msra.mxu0 0
        %553 = vmatprep.subr.bf16.mxu0 0
        %554 = vmatpush1.bf16.msra.mxu0 0
        %555 = vmatprep.subr.bf16.mxu0 0
        %556 = vmatpush1.bf16.msra.mxu0 0
        %557 = vmatprep.subr.bf16.mxu0 0
        %558 = vmatpush1.bf16.msra.mxu0 0
        %559 = vmatprep.subr.bf16.mxu0 0
        %560 = vmatpush1.bf16.msra.mxu0 0
        %561 = vmatprep.subr.bf16.mxu0 0
        %562 = vmatpush1.bf16.msra.mxu0 0
        %563 = vmatprep.subr.bf16.mxu0 0
        %564 = vmatpush1.bf16.msra.mxu0 0
        %565 = vmatprep.subr.bf16.mxu0 0
        %566 = vmatpush1.bf16.msra.mxu0 0
        %567 = vmatprep.subr.bf16.mxu0 0
        %568 = vmatpush1.bf16.msra.mxu0 0
        %569 = vmatprep.subr.bf16.mxu0 0
        %570 = vmatpush1.bf16.msra.mxu0 0
        %571 = vmatprep.subr.bf16.mxu0 0
        %572 = vmatpush1.bf16.msra.mxu0 0
        %573 = vmatprep.mubr.bf16.mxu0 0
        %574 = vmatmul.mubr.bf16.gmra.mrb[0].mxu0 %v539
        %v575 = vpop.f32.mrb[0].mxu0
        %v576 = vadd.f32 0.0, %v575
        %v577 = vpop.f32.mrb[0].mxu0
        %v578 = vpop.f32.mrb[0].mxu0
        %v579 = vpop.f32.mrb[0].mxu0
        %580 = vdwg.mxu0
        %v585 = vunpack.c.l.b16 %v516
        %v586 = vunpack.c.l.b16 %v517
        %v587 = vunpack.c.l.b16 %v518
        %v588 = vunpack.c.l.b16 %v519
        %v589 = vpack.c.b16 %v586, %v585
        %v590 = vpack.c.b16 %v588, %v587
        %v594 = vsel %vm537, %v515, 0
        %596 = vmatprep.subr.bf16.mxu0 0
        %597 = vmatpush1.bf16.msra.mxu0 %v589
        %598 = vmatprep.subr.bf16.mxu0 0
        %599 = vmatpush1.bf16.msra.mxu0 %v590
        %600 = vmatprep.subr.bf16.mxu0 0
        %601 = vmatpush1.bf16.msra.mxu0 0
        %602 = vmatprep.subr.bf16.mxu0 0
        %603 = vmatpush1.bf16.msra.mxu0 0
        %604 = vmatprep.subr.bf16.mxu0 0
        %605 = vmatpush1.bf16.msra.mxu0 0
        %606 = vmatprep.subr.bf16.mxu0 0
        %607 = vmatpush1.bf16.msra.mxu0 0
        %608 = vmatprep.subr.bf16.mxu0 0
        %609 = vmatpush1.bf16.msra.mxu0 0
        %610 = vmatprep.subr.bf16.mxu0 0
        %611 = vmatpush1.bf16.msra.mxu0 0
        %612 = vmatprep.subr.bf16.mxu0 0
        %613 = vmatpush1.bf16.msra.mxu0 0
        %614 = vmatprep.subr.bf16.mxu0 0
        %615 = vmatpush1.bf16.msra.mxu0 0
        %616 = vmatprep.subr.bf16.mxu0 0
        %617 = vmatpush1.bf16.msra.mxu0 0
        %618 = vmatprep.subr.bf16.mxu0 0
        %619 = vmatpush1.bf16.msra.mxu0 0
        %620 = vmatprep.subr.bf16.mxu0 0
        %621 = vmatpush1.bf16.msra.mxu0 0
        %622 = vmatprep.subr.bf16.mxu0 0
        %623 = vmatpush1.bf16.msra.mxu0 0
        %624 = vmatprep.subr.bf16.mxu0 0
        %625 = vmatpush1.bf16.msra.mxu0 0
        %626 = vmatprep.subr.bf16.mxu0 0
        %627 = vmatpush1.bf16.msra.mxu0 0
        %628 = vmatprep.mubr.bf16.mxu0 0
        %629 = vmatmul.mubr.bf16.gmra.mrb[0].mxu0 %v594
        %v630 = vpop.f32.mrb[0].mxu0
        %v631 = vadd.f32 %v576, %v630
        %v632 = vpop.f32.mrb[0].mxu0
        %v633 = vpop.f32.mrb[0].mxu0
        %v634 = vpop.f32.mrb[0].mxu0
        %635 = vdwg.mxu0
        %v636 = vld [vmem:[%s4] sm:$0x1]
        %v638 = vlaneseq
        %v639 = vshrl.u32 %v638, 7
        %v640 = vsub.s32 0, %v639
        %v641 = vrot.slane %v636, %v640
        %v643 = vadd.f32 %v631, %v641
        %v644 = vxor.u32 %v643, 2147483648
        %v645 = vmul.f32 %v644, 1.442695
        %v646 = vpow.pop %v645
        %v647 = vadd.f32 %v646, 1.0
        %v648 = vrcp.pop %v647
        %v649 = vmul.f32 1.0, %v648
        %v650 = vtanh.pop %v643
        %v651 = vmul.f32 %v649, %v514
        %653 = vrot.lane.b32.xlu0 %v650, 32
        %v654 = vpop.permute.xlu0 %653
        %v656 = vmul.f32 %v649, %v654
        %658 = vrot.lane.b32.xlu0 %v656, 32
        %v659 = vpop.permute.xlu0 %658
        %v661 = vadd.f32 %v651, %v659
        %v662 = vtanh.pop %v661
        %664 = vrot.lane.b32.xlu0 %v662, 32
        %v665 = vpop.permute.xlu0 %664
        %v667 = vmul.f32 %v649, %v665
        %v668 = vpack.c.bf16 %v667, %v667
        %v669 = vld [vmem:[%s5] sm:$0xf]
        %v670 = vld [vmem:[%s5 + $0x4] sm:$0xf]
        %v671 = vld [vmem:[%s5 + $0x8] sm:$0xf]
        %v672 = vld [vmem:[%s5 + $0xc] sm:$0xf]
        %v673 = vld [vmem:[%s6] sm:$0xf]
        %v674 = vld [vmem:[%s6 + $0x4] sm:$0xf]
        %v675 = vld [vmem:[%s6 + $0x8] sm:$0xf]
        %v676 = vld [vmem:[%s6 + $0xc] sm:$0xf]
        %678 = vrot.lane.b32.xlu0 %v520, 64
        %v679 = vpop.permute.xlu0 %678
        %v684 = vunpack.c.l.b16 %v673
        %v685 = vunpack.c.l.b16 %v674
        %v686 = vunpack.c.l.b16 %v675
        %v687 = vunpack.c.l.b16 %v676
        %v688 = vpack.c.b16 %v685, %v684
        %v689 = vpack.c.b16 %v687, %v686
        %v693 = vsel %vm537, %v679, 0
        %695 = vmatprep.subr.bf16.mxu0 0
        %696 = vmatpush1.bf16.msra.mxu0 %v688
        %697 = vmatprep.subr.bf16.mxu0 0
        %698 = vmatpush1.bf16.msra.mxu0 %v689
        %699 = vmatprep.subr.bf16.mxu0 0
        %700 = vmatpush1.bf16.msra.mxu0 0
        %701 = vmatprep.subr.bf16.mxu0 0
        %702 = vmatpush1.bf16.msra.mxu0 0
        %703 = vmatprep.subr.bf16.mxu0 0
        %704 = vmatpush1.bf16.msra.mxu0 0
        %705 = vmatprep.subr.bf16.mxu0 0
        %706 = vmatpush1.bf16.msra.mxu0 0
        %707 = vmatprep.subr.bf16.mxu0 0
        %708 = vmatpush1.bf16.msra.mxu0 0
        %709 = vmatprep.subr.bf16.mxu0 0
        %710 = vmatpush1.bf16.msra.mxu0 0
        %711 = vmatprep.subr.bf16.mxu0 0
        %712 = vmatpush1.bf16.msra.mxu0 0
        %713 = vmatprep.subr.bf16.mxu0 0
        %714 = vmatpush1.bf16.msra.mxu0 0
        %715 = vmatprep.subr.bf16.mxu0 0
        %716 = vmatpush1.bf16.msra.mxu0 0
        %717 = vmatprep.subr.bf16.mxu0 0
        %718 = vmatpush1.bf16.msra.mxu0 0
        %719 = vmatprep.subr.bf16.mxu0 0
        %720 = vmatpush1.bf16.msra.mxu0 0
        %721 = vmatprep.subr.bf16.mxu0 0
        %722 = vmatpush1.bf16.msra.mxu0 0
        %723 = vmatprep.subr.bf16.mxu0 0
        %724 = vmatpush1.bf16.msra.mxu0 0
        %725 = vmatprep.subr.bf16.mxu0 0
        %726 = vmatpush1.bf16.msra.mxu0 0
        %727 = vmatprep.mubr.bf16.mxu0 0
        %728 = vmatmul.mubr.bf16.gmra.mrb[0].mxu0 %v693
        %v729 = vpop.f32.mrb[0].mxu0
        %v730 = vadd.f32 0.0, %v729
        %v731 = vpop.f32.mrb[0].mxu0
        %v732 = vpop.f32.mrb[0].mxu0
        %v733 = vpop.f32.mrb[0].mxu0
        %734 = vdwg.mxu0
        %736 = vrot.lane.b32.xlu0 %v668, 64
        %v737 = vpop.permute.xlu0 %736
        %v742 = vunpack.c.l.b16 %v669
        %v743 = vunpack.c.l.b16 %v670
        %v744 = vunpack.c.l.b16 %v671
        %v745 = vunpack.c.l.b16 %v672
        %v746 = vpack.c.b16 %v743, %v742
        %v747 = vpack.c.b16 %v745, %v744
        %v751 = vsel %vm537, %v737, 0
        %753 = vmatprep.subr.bf16.mxu0 0
        %754 = vmatpush1.bf16.msra.mxu0 %v746
        %755 = vmatprep.subr.bf16.mxu0 0
        %756 = vmatpush1.bf16.msra.mxu0 %v747
        %757 = vmatprep.subr.bf16.mxu0 0
        %758 = vmatpush1.bf16.msra.mxu0 0
        %759 = vmatprep.subr.bf16.mxu0 0
        %760 = vmatpush1.bf16.msra.mxu0 0
        %761 = vmatprep.subr.bf16.mxu0 0
        %762 = vmatpush1.bf16.msra.mxu0 0
        %763 = vmatprep.subr.bf16.mxu0 0
        %764 = vmatpush1.bf16.msra.mxu0 0
        %765 = vmatprep.subr.bf16.mxu0 0
        %766 = vmatpush1.bf16.msra.mxu0 0
        %767 = vmatprep.subr.bf16.mxu0 0
        %768 = vmatpush1.bf16.msra.mxu0 0
        %769 = vmatprep.subr.bf16.mxu0 0
        %770 = vmatpush1.bf16.msra.mxu0 0
        %771 = vmatprep.subr.bf16.mxu0 0
        %772 = vmatpush1.bf16.msra.mxu0 0
        %773 = vmatprep.subr.bf16.mxu0 0
        %774 = vmatpush1.bf16.msra.mxu0 0
        %775 = vmatprep.subr.bf16.mxu0 0
        %776 = vmatpush1.bf16.msra.mxu0 0
        %777 = vmatprep.subr.bf16.mxu0 0
        %778 = vmatpush1.bf16.msra.mxu0 0
        %779 = vmatprep.subr.bf16.mxu0 0
        %780 = vmatpush1.bf16.msra.mxu0 0
        %781 = vmatprep.subr.bf16.mxu0 0
        %782 = vmatpush1.bf16.msra.mxu0 0
        %783 = vmatprep.subr.bf16.mxu0 0
        %784 = vmatpush1.bf16.msra.mxu0 0
        %785 = vmatprep.mubr.bf16.mxu0 0
        %786 = vmatmul.mubr.bf16.gmra.mrb[0].mxu0 %v751
        %v787 = vpop.f32.mrb[0].mxu0
        %v788 = vadd.f32 %v730, %v787
        %v789 = vpop.f32.mrb[0].mxu0
        %v790 = vpop.f32.mrb[0].mxu0
        %v791 = vpop.f32.mrb[0].mxu0
        %792 = vdwg.mxu0
        %v793 = vld [vmem:[%s7] sm:$0x1]
        %v795 = vlaneseq
        %v796 = vshrl.u32 %v795, 7
        %v797 = vsub.s32 0, %v796
        %v798 = vrot.slane %v793, %v797
        %v800 = vadd.f32 %v788, %v798
        %v801 = vxor.u32 %v800, 2147483648
        %v802 = vmul.f32 %v801, 1.442695
        %v803 = vpow.pop %v802
        %v804 = vadd.f32 %v803, 1.0
        %v805 = vrcp.pop %v804
        %v806 = vmul.f32 1.0, %v805
        %v807 = vtanh.pop %v800
        %809 = vrot.lane.b32.xlu0 %v514, 64
        %v810 = vpop.permute.xlu0 %809
        %v812 = vmul.f32 %v806, %v810
        %814 = vrot.lane.b32.xlu0 %v807, 32
        %v815 = vpop.permute.xlu0 %814
        %v817 = vmul.f32 %v806, %v815
        %819 = vrot.lane.b32.xlu0 %v817, 32
        %v820 = vpop.permute.xlu0 %819
        %v822 = vadd.f32 %v812, %v820
        %v823 = vtanh.pop %v822
        %825 = vrot.lane.b32.xlu0 %v823, 32
        %v826 = vpop.permute.xlu0 %825
        %v828 = vmul.f32 %v806, %v826
        %830 = vrot.lane.b32.xlu0 %v667, 64
        %v831 = vpop.permute.xlu0 %830
        %834 = vrot.lane.b32.xlu0 %v822, 64
        %v835 = vpop.permute.xlu0 %834
        %v837 = vsel %vm537, %v831, %v661
        %v838 = vsel %vm470, %v837, %v828
        %vm839 = vcmask 785408
        %v840 = vsel %vm839, %v838, %v835
        %841 = vst [vmem:[#allocation2] sm:$0xff] %v840
        %p842 = scmp.eq.s32.totalorder %s33, 3
        // Predicated region
        $region65: #{decoder_decode.1} parent=59 // pred_check
          %p843 = pneg %p842
        $region66: #{decoder_decode.1} parent=59 // pred_check_branch
          %845 = sbr.rel (%p843) target = $region68
        $region67: #{decoder_decode.1} parent=59 // pred_region
          %846 = vst [vmem:[%s12] sm:$0xff] %v840
        $region68: #{decoder_decode.1} parent=59 // pred_fallthru
          _
        %v847 = vpack.c.bf16 %v828, %v828
        %v848 = vld [vmem:[%s8] sm:$0xf]
        %v849 = vld [vmem:[%s8 + $0x4] sm:$0xf]
        %v850 = vld [vmem:[%s8 + $0x8] sm:$0xf]
        %v851 = vld [vmem:[%s8 + $0xc] sm:$0xf]
        %v852 = vld [vmem:[%s9] sm:$0x1]
        %v854 = vlaneseq
        %v855 = vshrl.u32 %v854, 7
        %v856 = vsub.s32 0, %v855
        %v857 = vrot.slane %v852, %v856
        %860 = vrot.lane.b32.xlu0 %v847, 64
        %v861 = vpop.permute.xlu0 %860
        %v866 = vunpack.c.l.b16 %v848
        %v867 = vunpack.c.l.b16 %v849
        %v868 = vunpack.c.l.b16 %v850
        %v869 = vunpack.c.l.b16 %v851
        %v870 = vpack.c.b16 %v867, %v866
        %v871 = vpack.c.b16 %v869, %v868
        %v875 = vsel %vm537, %v861, 0
        %877 = vmatprep.subr.bf16.mxu0 0
        %878 = vmatpush1.bf16.msra.mxu0 %v870
        %879 = vmatprep.subr.bf16.mxu0 0
        %880 = vmatpush1.bf16.msra.mxu0 %v871
        %881 = vmatprep.subr.bf16.mxu0 0
        %882 = vmatpush1.bf16.msra.mxu0 0
        %883 = vmatprep.subr.bf16.mxu0 0
        %884 = vmatpush1.bf16.msra.mxu0 0
        %885 = vmatprep.subr.bf16.mxu0 0
        %886 = vmatpush1.bf16.msra.mxu0 0
        %887 = vmatprep.subr.bf16.mxu0 0
        %888 = vmatpush1.bf16.msra.mxu0 0
        %889 = vmatprep.subr.bf16.mxu0 0
        %890 = vmatpush1.bf16.msra.mxu0 0
        %891 = vmatprep.subr.bf16.mxu0 0
        %892 = vmatpush1.bf16.msra.mxu0 0
        %893 = vmatprep.subr.bf16.mxu0 0
        %894 = vmatpush1.bf16.msra.mxu0 0
        %895 = vmatprep.subr.bf16.mxu0 0
        %896 = vmatpush1.bf16.msra.mxu0 0
        %897 = vmatprep.subr.bf16.mxu0 0
        %898 = vmatpush1.bf16.msra.mxu0 0
        %899 = vmatprep.subr.bf16.mxu0 0
        %900 = vmatpush1.bf16.msra.mxu0 0
        %901 = vmatprep.subr.bf16.mxu0 0
        %902 = vmatpush1.bf16.msra.mxu0 0
        %903 = vmatprep.subr.bf16.mxu0 0
        %904 = vmatpush1.bf16.msra.mxu0 0
        %905 = vmatprep.subr.bf16.mxu0 0
        %906 = vmatpush1.bf16.msra.mxu0 0
        %907 = vmatprep.subr.bf16.mxu0 0
        %908 = vmatpush1.bf16.msra.mxu0 0
        %909 = vmatprep.mubr.bf16.mxu0 0
        %910 = vmatmul.mubr.bf16.gmra.mrb[0].mxu0 %v875
        %v911 = vpop.f32.mrb[0].mxu0
        %v912 = vadd.f32 %v857, %v911
        %v913 = vpop.f32.mrb[0].mxu0
        %v914 = vpop.f32.mrb[0].mxu0
        %v915 = vpop.f32.mrb[0].mxu0
        %916 = vdwg.mxu0
        %917 = vmax.xlane.f32.xlu0 %v912
        %v918 = vpop.xlane.xlu0 %917
        %v919 = vsub.f32 %v912, %v918
        %v920 = vmul.f32 %v919, 1.442695
        %v921 = vpow.pop %v920
        %922 = vadd.xlane.f32.xlu0 %v921
        %v923 = vpop.xlane.xlu0 %922
        %v924 = vlog2.pop %v923
        %v925 = vmul.f32 %v924, 0.6931472
        %v926 = vsub.f32 %v919, %v925
        %927 = vst [vmem:[%s367] sm:$0xff] %v926
        %s928 = sand.u32 %s251, 1
        %s929 = scalar_lea.sflag [#allocation6], %s928
        %s930 = sand.u32 %s251, 1
        %s931 = smul.addr %s930, 8
        %s932 = scalar_lea.vmem [#allocation5], %s931
        // Predicated region
        $region69: #{decoder_decode.1} parent=59 // pred_check
          %p933 = pneg %p261
        $region70: #{decoder_decode.1} parent=59 // pred_check_branch
          %935 = sbr.rel (%p933) target = $region72
        $region71: #{decoder_decode.1} parent=59 // pred_region
          %s937 = ssub.s32 128, 128
          %938 = vsyncadd %s929, %s937
          %s939 = smul.addr %s33, 128
          %s940 = scalar_lea.hbm %s11, %s939
          %s942 = sshll.u32 %s932, 4
          %s943 = int_to_ptr.vmem [resolvable:$true] %s942
          %945 = dma.vmem_to_hbm [thread:$0]  %s943, 128, %s940, %s929
        $region72: #{decoder_decode.1} parent=59 // pred_fallthru
          _
        // Predicated region
        $region73: #{decoder_decode.1} parent=59 // pred_check
          %p946 = pneg %p282
        $region74: #{decoder_decode.1} parent=59 // pred_check_branch
          %948 = sbr.rel (%p946) target = $region76
        $region75: #{decoder_decode.1} parent=59 // pred_region
          _
        $region76: #{decoder_decode.1} parent=59 // pred_fallthru
          _
        // Predicated region
        $region77: #{decoder_decode.1} parent=59 // pred_check
          %p949 = pneg %p282
        $region78: #{decoder_decode.1} parent=59 // pred_check_branch
          %951 = sbr.rel (%p949) target = $region80
        $region79: #{decoder_decode.1} parent=59 // pred_region
          _
        $region80: #{decoder_decode.1} parent=59 // pred_fallthru
          _
      $region60: #{decoder_decode.1} parent=5 // pred_fallthru
        _
      %p952 = scmp.le.s32.totalorder 2, %s28
      // Predicated region
      $region81: #{decoder_decode.1} parent=5 // pred_check
        %p953 = pneg %p952
      $region82: #{decoder_decode.1} parent=5 // pred_check_branch
        %955 = sbr.rel (%p953) target = $region84
      $region83: #{decoder_decode.1} parent=5 // pred_region
        %s956 = ssub.s32 %s28, 2
        // Predicated region
        $region85: #{decoder_decode.1} parent=83 // pred_check
          %p957 = pneg %p267
        $region86: #{decoder_decode.1} parent=83 // pred_check_branch
          %959 = sbr.rel (%p957) target = $region88
        $region87: #{decoder_decode.1} parent=83 // pred_region
          %s960 = sand.u32 %s252, 1
          %s961 = scalar_lea.sflag [#allocation6], %s960
          %s962 = sand.u32 %s252, 1
          %s963 = smul.addr %s962, 8
          %s964 = scalar_lea.vmem [#allocation5], %s963
          %965 = dma.done %s961, 128
        $region88: #{decoder_decode.1} parent=83 // pred_fallthru
          _
      $region84: #{decoder_decode.1} parent=5 // pred_fallthru
        _
    $region6: #{decoder_decode.1} parent=1 // loop_footer
      %s32 = sadd.s32 1, %s28
    $region7: #{decoder_decode.1} parent=1 // loop_footer_branch
      %27 = sbr.rel target = $region3
    $region8: #{decoder_decode.1} parent=1 // loop_exit
      _
    %966 = vsyncpa [#allocation6], 1
    %s967 = scalar_lea.sflag [#allocation6], 1
    %968 = vsyncpa %s967, 1

</llo_original>
